<compile_context>
chip_gen: v6e
topology: v6e:2x2x1
jax: 0.10.0
libtpu: 0.0.40
codegen_flags: <defaults>
</compile_context>

<pallas_src>
import functools

import jax
import jax.numpy as jnp
from jax.experimental import pallas as pl
from jax.experimental.pallas import tpu as pltpu


# ----------------------------------------------------------------------------
# Backward kernel: per-column (over dim 0) mean / biased var / normalize.
# ----------------------------------------------------------------------------
def _gbn_bwd_kernel(var_floor, inv_floor, scale_ref, g_ref, o_ref):
    g = g_ref[...].astype(jnp.float32)
    mean = jnp.mean(g, axis=0, keepdims=True)
    c = g - mean
    # biased (unbiased=False) variance; std < epi  <=>  var < epi^2
    var = jnp.mean(c * c, axis=0, keepdims=True)
    inv = jnp.where(var < var_floor, inv_floor, jax.lax.rsqrt(var))
    # fold scale into the (1, tile) row, then one broadcast multiply per elem
    o_ref[...] = (c * (inv * scale_ref[0])).astype(o_ref.dtype)


def _round_up_128(n):
    return ((n + 127) // 128) * 128


def _choose_tile(B, F, itemsize):
    """Largest lane tile (multiple of 128) whose double-buffered in+out blocks
    fit a conservative VMEM budget, while keeping >= 2 grid steps when F
    allows (so the 'parallel' axis can shard across v7x's 2 TensorCores)."""
    budget = 20 << 20  # conservative across v5e / v6e / v7x
    # 2 buffers x (input block + output block); compute upcasts to f32
    per_lane = 4 * B * max(int(itemsize), 4)
    budget_tile = max((budget // per_lane) // 128 * 128, 128)
    f128 = _round_up_128(F)
    tile = min(budget_tile, f128)
    if f128 >= 256:
        # keep at least 2 grid steps for megacore sharding
        tile = min(tile, _round_up_128((f128 + 1) // 2))
    return max(tile, 128)


def _gbn_backward_pallas(g2d, scale, epi, suppression_factor):
    B, F = g2d.shape
    itemsize = jnp.dtype(g2d.dtype).itemsize
    tile = _choose_tile(B, F, itemsize)
    grid = ((F + tile - 1) // tile,)  # ragged last block is masked by Pallas

    # Compile-time scalar constants (no in-kernel scalar arithmetic).
    epi = float(epi)
    supp = float(suppression_factor)
    var_floor = epi * epi
    inv_floor = 1.0 / (epi * supp)

    scale_smem = jnp.asarray(scale, dtype=jnp.float32).reshape(1)
    kernel = functools.partial(_gbn_bwd_kernel, var_floor, inv_floor)

    cost = pl.CostEstimate(
        flops=6 * B * F,
        transcendentals=F,
        bytes_accessed=2 * B * F * int(itemsize) + 4,
    )

    return pl.pallas_call(
        kernel,
        out_shape=jax.ShapeDtypeStruct((B, F), g2d.dtype),
        grid_spec=pltpu.PrefetchScalarGridSpec(
            num_scalar_prefetch=0,
            grid=grid,
            in_specs=[
                pl.BlockSpec(memory_space=pltpu.MemorySpace.SMEM),  # scale (1,)
                pl.BlockSpec((B, tile), lambda j: (0, j)),          # grad block
            ],
            out_specs=pl.BlockSpec((B, tile), lambda j: (0, j)),
        ),
        compiler_params=pltpu.CompilerParams(
            dimension_semantics=("parallel",),
            vmem_limit_bytes=48 << 20,
        ),
        cost_estimate=cost,
    )(scale_smem, g2d)


# ----------------------------------------------------------------------------
# custom_vjp reproducing GBN_functional.apply (forward = identity, no kernel)
# ----------------------------------------------------------------------------
@functools.partial(jax.custom_vjp, nondiff_argnums=(2, 3))
def gbn_functional(x, scale, epi=1e-12, suppression_factor=1000.0):
    del scale, epi, suppression_factor
    return x  # identity forward — no Pallas copy, no extra HBM traffic


def _gbn_fwd(x, scale, epi, suppression_factor):
    return x, scale  # residual: traced working scale


def _gbn_bwd(epi, suppression_factor, scale, g):
    B = g.shape[0]
    g2d = g.reshape(B, -1)
    gx2d = _gbn_backward_pallas(g2d, scale, epi, suppression_factor)
    # PyTorch returns None for scale's grad -> zero cotangent here.
    return gx2d.reshape(g.shape), jnp.zeros_like(scale)


gbn_functional.defvjp(_gbn_fwd, _gbn_bwd)


# ----------------------------------------------------------------------------
# GBN module equivalent
# ----------------------------------------------------------------------------
class GBN:
    def __init__(self, scale=1.0, *, epi=1e-12, suppression_factor=1000.0):
        self.scale = jnp.asarray([scale], dtype=jnp.float32)
        self.dynamic_scale = jnp.ones((1,), dtype=jnp.float32)
        # epi / suppression_factor are compile-time constants of the kernel.
        self.epi = float(epi)
        self.suppression_factor = float(suppression_factor)

    def set_dynamic_scale(self, dynamic_scale):
        self.dynamic_scale = jnp.asarray(dynamic_scale,
                                         dtype=jnp.float32).reshape(1)

    def get_working_scale(self):
        # Traced (1,) f32 array: no device->host sync, no retrace when the
        # dynamic scale value changes.
        return self.scale * self.dynamic_scale

    def __call__(self, x):
        if x.shape[0] == 1:
            raise ValueError(
                "expected anything greater than 1 for the first dimension "
                "(got 1 for the first dim)")
        if x.ndim == 1:
            raise ValueError("expected 2D or higher dimension input "
                             "(got 1D input)")
        return gbn_functional(x, self.get_working_scale(),
                              self.epi, self.suppression_factor)


if __name__ == "__main__":
    key = jax.random.PRNGKey(0)
    # NCHW input, batch=2, channels=4, spatial=16x16 -> flattened lane dim 1024.
    x = jax.random.normal(key, (2, 4, 16, 16), dtype=jnp.float32)

    mod = GBN(scale=1.0)

    # Forward: identity.
    y = mod(x)
    y = jax.block_until_ready(y)
    assert y.shape == x.shape and y.dtype == x.dtype
    assert bool(jnp.allclose(y, x)), "forward is not identity"

    # Exercise the backward Pallas kernel (the module's real compute path).
    w = jnp.arange(x.size, dtype=x.dtype).reshape(x.shape)

    def loss(v):
        return jnp.sum(mod(v) * w)

    gx = jax.grad(loss)(x)
    gx = jax.block_until_ready(gx)

    # Pure-JAX reference (sqrt + divide form, matching PyTorch exactly).
    g = w
    mean = jnp.mean(g, axis=0, keepdims=True)
    c = g - mean
    std = jnp.sqrt(jnp.mean(c * c, axis=0, keepdims=True))
    std = jnp.where(std < 1e-12, 1e-12 * 1000.0, std)
    ref = c / std * 1.0
    assert bool(jnp.allclose(gx, ref, rtol=1e-5, atol=1e-5)), "backward mismatch"

    print("KERNEL_OK")
</pallas_src>

<mosaic_0001>
module attributes {stable_mosaic.version = 11 : i64} {
  func.func @_gbn_bwd_kernel(%arg0: i32, %arg1: memref<1xf32, #tpu.memory_space<smem>>, %arg2: memref<2x512xf32, #tpu.memory_space<vmem>>, %arg3: memref<2x512xf32, #tpu.memory_space<vmem>>) attributes {dimension_semantics = [#tpu.dimension_semantics<parallel>], iteration_bounds = array<i64: 2>, scalar_prefetch = 0 : i64, scratch_operands = 0 : i64, tpu.core_type = #tpu.core_type<tc>, window_params = [{transform_indices = @transform_0, window_bounds = array<i64: 1>}, {transform_indices = @transform_1, window_bounds = array<i64: 2, 512>}, {transform_indices = @transform_2, window_bounds = array<i64: 2, 512>}]} {
    %c0 = arith.constant 0 : index
    %c0_0 = arith.constant 0 : index
    %0 = vector.load %arg2[%c0, %c0_0] : memref<2x512xf32, #tpu.memory_space<vmem>>, vector<2x512xf32>
    %cst = arith.constant dense<0.000000e+00> : vector<512xf32>
    %1 = vector.multi_reduction <add>, %0, %cst [0] : vector<2x512xf32> to vector<512xf32>
    %2 = vector.shape_cast %1 : vector<512xf32> to vector<1x512xf32>
    %cst_1 = arith.constant 2.000000e+00 : f32
    %3 = vector.broadcast %cst_1 : f32 to vector<1x512xf32>
    %4 = arith.divf %2, %3 : vector<1x512xf32>
    %5 = vector.broadcast %4 : vector<1x512xf32> to vector<2x512xf32>
    %6 = arith.subf %0, %5 : vector<2x512xf32>
    %7 = arith.mulf %6, %6 : vector<2x512xf32>
    %cst_2 = arith.constant dense<0.000000e+00> : vector<512xf32>
    %8 = vector.multi_reduction <add>, %7, %cst_2 [0] : vector<2x512xf32> to vector<512xf32>
    %9 = vector.shape_cast %8 : vector<512xf32> to vector<1x512xf32>
    %cst_3 = arith.constant 2.000000e+00 : f32
    %10 = vector.broadcast %cst_3 : f32 to vector<1x512xf32>
    %11 = arith.divf %9, %10 : vector<1x512xf32>
    %cst_4 = arith.constant 1.000000e-24 : f32
    %12 = vector.broadcast %cst_4 : f32 to vector<1x512xf32>
    %13 = arith.cmpf olt, %11, %12 : vector<1x512xf32>
    %14 = math.rsqrt %11 : vector<1x512xf32>
    %cst_5 = arith.constant 1.000000e+09 : f32
    %15 = vector.broadcast %cst_5 : f32 to vector<1x512xf32>
    %16 = arith.select %13, %15, %14 : vector<1x512xi1>, vector<1x512xf32>
    %c0_6 = arith.constant 0 : index
    %17 = memref.load %arg1[%c0_6] : memref<1xf32, #tpu.memory_space<smem>>
    %18 = vector.broadcast %17 : f32 to vector<1x512xf32>
    %19 = arith.mulf %16, %18 : vector<1x512xf32>
    %20 = vector.broadcast %19 : vector<1x512xf32> to vector<2x512xf32>
    %21 = arith.mulf %6, %20 : vector<2x512xf32>
    %c0_7 = arith.constant 0 : index
    %c0_8 = arith.constant 0 : index
    %22 = vector.load %arg3[%c0_7, %c0_8] : memref<2x512xf32, #tpu.memory_space<vmem>>, vector<2x512xf32>
    tpu.vector_store %arg3[%c0_7, %c0_8], %21 {strides = array<i32>} : memref<2x512xf32, #tpu.memory_space<vmem>>, vector<2x512xf32>,
    return
  }
  func.func @transform_0(%arg0: i32) -> i32 {
    %c0_i32 = arith.constant 0 : i32
    %c0_i32_0 = arith.constant 0 : i32
    return %c0_i32 : i32
  }
  func.func @transform_1(%arg0: i32) -> (i32, i32) {
    %c0_i32 = arith.constant 0 : i32
    %c0_i32_0 = arith.constant 0 : i32
    return %c0_i32, %arg0 : i32, i32
  }
  func.func @transform_2(%arg0: i32) -> (i32, i32) {
    %c0_i32 = arith.constant 0 : i32
    %c0_i32_0 = arith.constant 0 : i32
    return %c0_i32, %arg0 : i32, i32
  }
}

</mosaic_0001>

<llo_original>
// kernel: tpu_custom_call.1
$region0: #{tpu_custom_call.1}
  #allocation0 [shape = 'u32[]', space=smem, size = 0x4, offset = 0x4, fixed_abs, tag = 'smem constant byte address 0x4 - core index']
  #allocation1 [shape = 'u32[144,128]{1,0:T(1,128)}', space=vmem, size = 0x12000, scoped, tag = 'internal scratch']
  #allocation2 [shape = 'f32[1]{0:T(128)S(6)}', space=smem, size = 0x200, scoped, tag = 'scoped memory for tpu_custom_call.1']
  %s0 = inlined_call_operand.<no memory space> [shape: f32[1], index: 0, kind: input, shape index: {}]
  %s1 = inlined_call_operand.hbm [shape: f32[2,1024], index: 1, kind: input, shape index: {}]
  %s2 = inlined_call_operand.hbm [shape: f32[2,1024], index: 2, kind: output, shape index: {}]
  %s3 = sld [smem:[#allocation0]]
  $region45: #{tpu_custom_call.1} parent=0
    _
  %s5 = ssub.s32 1, %s3
  %s6 = scalar_select 0, %s5, %s3
  %7 = sst [smem:[#allocation2]] %s0
  $region1: #{tpu_custom_call.1} parent=0
    #allocation3 [shape = 'u8[8192]{0}', space=vmem, size = 0x2000, scoped, tag = 'input window, operand 1']
    #allocation4 [shape = 's32[2]{0}', space=sflag, size = 0x8, scoped, tag = 'scoped memory for tpu_custom_call.1']
    #allocation5 [shape = 's32[2]{0}', space=sflag, size = 0x8, scoped, tag = 'scoped memory for tpu_custom_call.1']
    #allocation6 [shape = 'u8[8192]{0}', space=vmem, size = 0x2000, scoped, tag = 'output window, operand 0']
    %8 = vsyncpa [#allocation4], 0
    %s9 = scalar_lea.sflag [#allocation4], 1
    %10 = vsyncpa %s9, 0
    %11 = vsyncpa [#allocation5], 0
    %s12 = scalar_lea.sflag [#allocation5], 1
    %13 = vsyncpa %s12, 0
    loop: start=0, step=1, limit=4
    $region2: #{tpu_custom_call.1} parent=1 // loop_pre_header
      _
    $region3: #{tpu_custom_call.1} parent=1 // loop_header
      %s15 = sphi 0, %s19
      %p16 = scmp.ge.s32.totalorder %s15, 4
      %s23 = sphi 0, %s23
      %s25 = sphi 0, %s23
      %s26 = sphi 0, %s25
      %s40 = sphi 0, %s26
      %s46 = sphi 0, %s48
      %s49 = sphi 0, %s46
      %s50 = sphi 0, %s49
      %s66 = sphi 0, %s50
      %s72 = sphi 0, %s74
      %s75 = sphi 0, %s72
      %s76 = sphi 0, %s75
      %s92 = sphi 0, %s76
    $region4: #{tpu_custom_call.1} parent=1 // loop_header_branch
      %18 = sbr.rel (%p16) target = $region8
    $region5: #{tpu_custom_call.1} parent=1 // loop_body
      %s20 = ssub.s32 %s15, 1
      %s21 = ssub.s32 %s15, 2
      %s22 = sadd.s32 %s15, 1
      %s24 = sadd.s32 %s23, 1
      %p27 = scmp.eq.s32.totalorder %s15, 1
      %p28 = scmp.ne.s32.totalorder %s23, %s25
      %p29 = scmp.eq.s32.totalorder %s15, 0
      %p30 = por %p28, %p29
      %p31 = scmp.ne.s32.totalorder %s23, %s25
      %p32 = scmp.eq.s32.totalorder %s20, 1
      %p33 = por %p31, %p32
      %p34 = scmp.ne.s32.totalorder %s25, %s26
      %p35 = scmp.eq.s32.totalorder %s20, 0
      %p36 = por %p34, %p35
      %p37 = scmp.ne.s32.totalorder %s25, %s26
      %p38 = scmp.eq.s32.totalorder %s21, 1
      %p39 = por %p37, %p38
      %p41 = scmp.ne.s32.totalorder %s26, %s40
      %p42 = scmp.eq.s32.totalorder %s21, 0
      %p43 = por %p41, %p42
      %s44 = ssub.s32 %s15, %s22
      %p45 = scmp.eq.s32.totalorder %s44, 0
      %s47 = sadd.s32 %s46, 1
      %s48 = scalar_select %p45, %s46, %s47
      %p51 = pneg %p45
      %p52 = scmp.eq.s32.totalorder %s15, 1
      %p53 = por %p51, %p52
      %p54 = scmp.ne.s32.totalorder %s46, %s49
      %p55 = scmp.eq.s32.totalorder %s15, 0
      %p56 = por %p54, %p55
      %p57 = scmp.ne.s32.totalorder %s46, %s49
      %p58 = scmp.eq.s32.totalorder %s20, 1
      %p59 = por %p57, %p58
      %p60 = scmp.ne.s32.totalorder %s49, %s50
      %p61 = scmp.eq.s32.totalorder %s20, 0
      %p62 = por %p60, %p61
      %p63 = scmp.ne.s32.totalorder %s49, %s50
      %p64 = scmp.eq.s32.totalorder %s21, 1
      %p65 = por %p63, %p64
      %p67 = scmp.ne.s32.totalorder %s50, %s66
      %p68 = scmp.eq.s32.totalorder %s21, 0
      %p69 = por %p67, %p68
      %s70 = ssub.s32 %s15, %s22
      %p71 = scmp.eq.s32.totalorder %s70, 0
      %s73 = sadd.s32 %s72, 1
      %s74 = scalar_select %p71, %s72, %s73
      %p77 = pneg %p71
      %p78 = scmp.eq.s32.totalorder %s15, 1
      %p79 = por %p77, %p78
      %p80 = scmp.ne.s32.totalorder %s72, %s75
      %p81 = scmp.eq.s32.totalorder %s15, 0
      %p82 = por %p80, %p81
      %p83 = scmp.ne.s32.totalorder %s72, %s75
      %p84 = scmp.eq.s32.totalorder %s20, 1
      %p85 = por %p83, %p84
      %p86 = scmp.ne.s32.totalorder %s75, %s76
      %p87 = scmp.eq.s32.totalorder %s20, 0
      %p88 = por %p86, %p87
      %p89 = scmp.ne.s32.totalorder %s75, %s76
      %p90 = scmp.eq.s32.totalorder %s21, 1
      %p91 = por %p89, %p90
      %p93 = scmp.ne.s32.totalorder %s76, %s92
      %p94 = scmp.eq.s32.totalorder %s21, 0
      %p95 = por %p93, %p94
      %p96 = scmp.le.s32.totalorder 1, %s15
      %p97 = scmp.lt.s32.totalorder %s15, 3
      %p98 = pnand %p96, %p97
      %p99 = pneg %p98
      // Predicated region
      $region9: #{tpu_custom_call.1} parent=5 // pred_check
        _
      $region10: #{tpu_custom_call.1} parent=5 // pred_check_branch
        %101 = sbr.rel (%p98) target = $region12
      $region11: #{tpu_custom_call.1} parent=5 // pred_region
        %s102 = ssub.s32 %s15, 1
        // Predicated region
        $region13: #{tpu_custom_call.1} parent=11 // pred_check
          %p103 = pneg %p36
        $region14: #{tpu_custom_call.1} parent=11 // pred_check_branch
          %105 = sbr.rel (%p103) target = $region16
        $region15: #{tpu_custom_call.1} parent=11 // pred_region
          _
        $region16: #{tpu_custom_call.1} parent=11 // pred_fallthru
          _
      $region12: #{tpu_custom_call.1} parent=5 // pred_fallthru
        _
      %p106 = scmp.lt.s32.totalorder %s15, 2
      // Predicated region
      $region17: #{tpu_custom_call.1} parent=5 // pred_check
        %p107 = pneg %p106
      $region18: #{tpu_custom_call.1} parent=5 // pred_check_branch
        %109 = sbr.rel (%p107) target = $region20
      $region19: #{tpu_custom_call.1} parent=5 // pred_region
        // Predicated region
        $region21: #{tpu_custom_call.1} parent=19 // pred_check
          %p110 = pneg %p56
        $region22: #{tpu_custom_call.1} parent=19 // pred_check_branch
          %112 = sbr.rel (%p110) target = $region24
        $region23: #{tpu_custom_call.1} parent=19 // pred_region
          %s113 = sand.u32 %s46, 1
          %s114 = scalar_lea.sflag [#allocation4], %s113
          %s115 = sand.u32 %s46, 1
          %s116 = smul.addr %s115, 8
          %s117 = scalar_lea.vmem [#allocation3], %s116
          %s118 = smul.u32 4, %s15
          %s120 = ssub.s32 128, 128
          %121 = vsyncadd %s114, %s120
          %s122 = smul.addr %s118, 32
          %s123 = scalar_lea.hbm %s1, %s122
          %s125 = sshll.u32 %s117, 4
          %s126 = int_to_ptr.vmem [resolvable:$true] %s125
          %128 = dma.hbm_to_vmem [thread:$0]  %s123, 128, %s126, %s114
        $region24: #{tpu_custom_call.1} parent=19 // pred_fallthru
          _
      $region20: #{tpu_custom_call.1} parent=5 // pred_fallthru
        _
      %p129 = scmp.le.s32.totalorder 1, %s15
      %p130 = scmp.lt.s32.totalorder %s15, 3
      %p131 = pnand %p129, %p130
      %p132 = pneg %p131
      // Predicated region
      $region25: #{tpu_custom_call.1} parent=5 // pred_check
        _
      $region26: #{tpu_custom_call.1} parent=5 // pred_check_branch
        %134 = sbr.rel (%p131) target = $region28
      $region27: #{tpu_custom_call.1} parent=5 // pred_region
        %s135 = ssub.s32 %s15, 1
        %s136 = sand.u32 %s49, 1
        %s137 = scalar_lea.sflag [#allocation4], %s136
        %s138 = sand.u32 %s49, 1
        %s139 = smul.addr %s138, 8
        %s140 = scalar_lea.vmem [#allocation3], %s139
        // Predicated region
        $region29: #{tpu_custom_call.1} parent=27 // pred_check
          %p141 = pneg %p62
        $region30: #{tpu_custom_call.1} parent=27 // pred_check_branch
          %143 = sbr.rel (%p141) target = $region32
        $region31: #{tpu_custom_call.1} parent=27 // pred_region
          %144 = dma.done %s137, 128
        $region32: #{tpu_custom_call.1} parent=27 // pred_fallthru
          _
        %p145 = pneg %p36
        %p146 = pneg %p33
        %s147 = sand.u32 %s49, 1
        %s148 = scalar_lea.sflag [#allocation4], %s147
        %s149 = sand.u32 %s49, 1
        %s150 = smul.addr %s149, 8
        %s151 = scalar_lea.vmem [#allocation3], %s150
        %p152 = pneg %p62
        %p153 = pneg %p59
        %p154 = pneg %p88
        %p155 = pneg %p85
        %s156 = sand.u32 %s75, 1
        %s157 = scalar_lea.sflag [#allocation5], %s156
        %s158 = sand.u32 %s75, 1
        %s159 = smul.addr %s158, 8
        %s160 = scalar_lea.vmem [#allocation6], %s159
        %s161 = smul.u32 4, %s20
        %s162 = smul.u32 4, %s20
        %v163 = vld [vmem:[%s140] sm:$0xff]
        %v165 = vcombine.high %v163, %v163
        %v167 = vunpack.c.l.s4 1983009808
        %v168 = vunpack.c.0.s8 %v167
        %v169 = vlaneseq
        %v170 = vshrl.u32 %v169, 7
        %v171 = vsub.s32 %v168, %v170
        %v172 = vrot.slane %v163, %v171
        %v174 = vunpack.c.l.s4 1983009808
        %v175 = vunpack.c.0.s8 %v174
        %v176 = vlaneseq
        %v177 = vshrl.u32 %v176, 7
        %v178 = vsub.s32 %v175, %v177
        %v179 = vrot.slane %v165, %v178
        %v180 = vcombine.high %v172, %v172
        %v181 = vcombine.high %v179, %v179
        %vm186 = vcmask 1041408
        %v187 = vsel %vm186, %v172, 0.0
        %v188 = vrot.slane %v187, 4
        %v189 = vadd.f32 %v187, %v188
        %v190 = vrot.slane %v189, 2
        %v191 = vadd.f32 %v189, %v190
        %v192 = vrot.slane %v191, 1
        %v193 = vadd.f32 %v191, %v192
        %v194 = vsel %vm186, %v180, 0.0
        %v195 = vrot.slane %v194, 4
        %v196 = vadd.f32 %v194, %v195
        %v197 = vrot.slane %v196, 2
        %v198 = vadd.f32 %v196, %v197
        %v199 = vrot.slane %v198, 1
        %v200 = vadd.f32 %v198, %v199
        %v201 = vsel %vm186, %v179, 0.0
        %v202 = vrot.slane %v201, 4
        %v203 = vadd.f32 %v201, %v202
        %v204 = vrot.slane %v203, 2
        %v205 = vadd.f32 %v203, %v204
        %v206 = vrot.slane %v205, 1
        %v207 = vadd.f32 %v205, %v206
        %v208 = vsel %vm186, %v181, 0.0
        %v209 = vrot.slane %v208, 4
        %v210 = vadd.f32 %v208, %v209
        %v211 = vrot.slane %v210, 2
        %v212 = vadd.f32 %v210, %v211
        %v213 = vrot.slane %v212, 1
        %v214 = vadd.f32 %v212, %v213
        %v215 = vrcp.pop 2.0
        %v216 = vmul.f32 %v193, %v215
        %v217 = vmul.f32 %v200, %v215
        %v218 = vmul.f32 %v207, %v215
        %v219 = vmul.f32 %v214, %v215
        %v224 = vcombine.low %v216, %v217
        %v225 = vcombine.low %v218, %v219
        %v227 = vunpack.c.l.s4 1983009808
        %v228 = vunpack.c.0.s8 %v227
        %v229 = vlaneseq
        %v230 = vshrl.u32 %v229, 7
        %v231 = vsub.s32 %v228, %v230
        %v232 = vrot.slane %v224, %v231
        %v234 = vunpack.c.l.s4 1983009808
        %v235 = vunpack.c.0.s8 %v234
        %v236 = vlaneseq
        %v237 = vshrl.u32 %v236, 7
        %v238 = vsub.s32 %v235, %v237
        %v239 = vrot.slane %v225, %v238
        %v240 = vcombine.low %v232, %v239
        %v242 = vsub.f32 %v163, %v240
        %v243 = vmul.f32 %v242, %v242
        %v245 = vcombine.high %v243, %v243
        %v247 = vunpack.c.l.s4 1983009808
        %v248 = vunpack.c.0.s8 %v247
        %v249 = vlaneseq
        %v250 = vshrl.u32 %v249, 7
        %v251 = vsub.s32 %v248, %v250
        %v252 = vrot.slane %v243, %v251
        %v254 = vunpack.c.l.s4 1983009808
        %v255 = vunpack.c.0.s8 %v254
        %v256 = vlaneseq
        %v257 = vshrl.u32 %v256, 7
        %v258 = vsub.s32 %v255, %v257
        %v259 = vrot.slane %v245, %v258
        %v260 = vcombine.high %v252, %v252
        %v261 = vcombine.high %v259, %v259
        %v266 = vsel %vm186, %v252, 0.0
        %v267 = vrot.slane %v266, 4
        %v268 = vadd.f32 %v266, %v267
        %v269 = vrot.slane %v268, 2
        %v270 = vadd.f32 %v268, %v269
        %v271 = vrot.slane %v270, 1
        %v272 = vadd.f32 %v270, %v271
        %v273 = vsel %vm186, %v260, 0.0
        %v274 = vrot.slane %v273, 4
        %v275 = vadd.f32 %v273, %v274
        %v276 = vrot.slane %v275, 2
        %v277 = vadd.f32 %v275, %v276
        %v278 = vrot.slane %v277, 1
        %v279 = vadd.f32 %v277, %v278
        %v280 = vsel %vm186, %v259, 0.0
        %v281 = vrot.slane %v280, 4
        %v282 = vadd.f32 %v280, %v281
        %v283 = vrot.slane %v282, 2
        %v284 = vadd.f32 %v282, %v283
        %v285 = vrot.slane %v284, 1
        %v286 = vadd.f32 %v284, %v285
        %v287 = vsel %vm186, %v261, 0.0
        %v288 = vrot.slane %v287, 4
        %v289 = vadd.f32 %v287, %v288
        %v290 = vrot.slane %v289, 2
        %v291 = vadd.f32 %v289, %v290
        %v292 = vrot.slane %v291, 1
        %v293 = vadd.f32 %v291, %v292
        %v294 = vmul.f32 %v272, %v215
        %v295 = vmul.f32 %v279, %v215
        %v296 = vmul.f32 %v286, %v215
        %v297 = vmul.f32 %v293, %v215
        %vm298 = vcmp.lt.f32.partialorder %v294, 1e-24
        %vm299 = vcmp.lt.f32.partialorder %v295, 1e-24
        %vm300 = vcmp.lt.f32.partialorder %v296, 1e-24
        %vm301 = vcmp.lt.f32.partialorder %v297, 1e-24
        %v302 = vrsqrt.pop %v294
        %v303 = vrsqrt.pop %v295
        %v304 = vrsqrt.pop %v296
        %v305 = vrsqrt.pop %v297
        %v306 = vsel %vm298, 1e+09, %v302
        %v307 = vsel %vm299, 1e+09, %v303
        %v308 = vsel %vm300, 1e+09, %v304
        %v309 = vsel %vm301, 1e+09, %v305
        %s310 = sld [smem:[#allocation2]]
        %v311 = vstv %s310
        %v312 = vmul.f32 %v306, %v311
        %v313 = vmul.f32 %v307, %v311
        %v314 = vmul.f32 %v308, %v311
        %v315 = vmul.f32 %v309, %v311
        %v320 = vcombine.low %v312, %v313
        %v321 = vcombine.low %v314, %v315
        %v323 = vunpack.c.l.s4 1983009808
        %v324 = vunpack.c.0.s8 %v323
        %v325 = vlaneseq
        %v326 = vshrl.u32 %v325, 7
        %v327 = vsub.s32 %v324, %v326
        %v328 = vrot.slane %v320, %v327
        %v330 = vunpack.c.l.s4 1983009808
        %v331 = vunpack.c.0.s8 %v330
        %v332 = vlaneseq
        %v333 = vshrl.u32 %v332, 7
        %v334 = vsub.s32 %v331, %v333
        %v335 = vrot.slane %v321, %v334
        %v336 = vcombine.low %v328, %v335
        %v338 = vmul.f32 %v242, %v336
        %339 = vst [vmem:[%s160] sm:$0xff] %v338
        %s340 = sand.u32 %s75, 1
        %s341 = scalar_lea.sflag [#allocation5], %s340
        %s342 = sand.u32 %s75, 1
        %s343 = smul.addr %s342, 8
        %s344 = scalar_lea.vmem [#allocation6], %s343
        // Predicated region
        $region33: #{tpu_custom_call.1} parent=27 // pred_check
          %p345 = pneg %p85
        $region34: #{tpu_custom_call.1} parent=27 // pred_check_branch
          %347 = sbr.rel (%p345) target = $region36
        $region35: #{tpu_custom_call.1} parent=27 // pred_region
          %s348 = smul.u32 4, %s20
          %s350 = ssub.s32 128, 128
          %351 = vsyncadd %s341, %s350
          %s352 = smul.addr %s348, 32
          %s353 = scalar_lea.hbm %s2, %s352
          %s355 = sshll.u32 %s344, 4
          %s356 = int_to_ptr.vmem [resolvable:$true] %s355
          %358 = dma.vmem_to_hbm [thread:$0]  %s356, 128, %s353, %s341
        $region36: #{tpu_custom_call.1} parent=27 // pred_fallthru
          _
      $region28: #{tpu_custom_call.1} parent=5 // pred_fallthru
        _
      %p359 = scmp.le.s32.totalorder 2, %s15
      // Predicated region
      $region37: #{tpu_custom_call.1} parent=5 // pred_check
        %p360 = pneg %p359
      $region38: #{tpu_custom_call.1} parent=5 // pred_check_branch
        %362 = sbr.rel (%p360) target = $region40
      $region39: #{tpu_custom_call.1} parent=5 // pred_region
        %s363 = ssub.s32 %s15, 2
        // Predicated region
        $region41: #{tpu_custom_call.1} parent=39 // pred_check
          %p364 = pneg %p91
        $region42: #{tpu_custom_call.1} parent=39 // pred_check_branch
          %366 = sbr.rel (%p364) target = $region44
        $region43: #{tpu_custom_call.1} parent=39 // pred_region
          %s367 = sand.u32 %s76, 1
          %s368 = scalar_lea.sflag [#allocation5], %s367
          %s369 = sand.u32 %s76, 1
          %s370 = smul.addr %s369, 8
          %s371 = scalar_lea.vmem [#allocation6], %s370
          %372 = dma.done %s368, 128
        $region44: #{tpu_custom_call.1} parent=39 // pred_fallthru
          _
      $region40: #{tpu_custom_call.1} parent=5 // pred_fallthru
        _
    $region6: #{tpu_custom_call.1} parent=1 // loop_footer
      %s19 = sadd.s32 1, %s15
    $region7: #{tpu_custom_call.1} parent=1 // loop_footer_branch
      %14 = sbr.rel target = $region3
    $region8: #{tpu_custom_call.1} parent=1 // loop_exit
      _
    %373 = vsyncpa [#allocation4], 1
    %s374 = scalar_lea.sflag [#allocation4], 1
    %375 = vsyncpa %s374, 1
    %376 = vsyncpa [#allocation5], 1
    %s377 = scalar_lea.sflag [#allocation5], 1
    %378 = vsyncpa %s377, 1

</llo_original>
